<compile_context>
chip_gen: v5e
topology: v5e:2x2
jax: 0.10.0
libtpu: 0.0.40
codegen_flags: <defaults>
</compile_context>

<pallas_src>
import jax
import jax.numpy as jnp
from jax.experimental import pallas as pl
from jax.experimental.pallas import tpu as pltpu

LANE = 128


def _round_up(n, m):
    return ((n + m - 1) // m) * m


def qnetwork_mlp_kernel(x_ref, w0_ref, b0_ref, w1_ref, b1_ref, w2_ref, b2_ref, out_ref):
    # Hidden layer 1: Linear + ReLU  (bf16 MXU matmul, f32 accumulate / bias / ReLU)
    h = jnp.dot(x_ref[...], w0_ref[...], preferred_element_type=jnp.float32) + b0_ref[...]
    h = jnp.maximum(h, 0.0)
    # Hidden layer 2: Linear + ReLU
    h = jnp.dot(h.astype(w1_ref.dtype), w1_ref[...],
                preferred_element_type=jnp.float32) + b1_ref[...]
    h = jnp.maximum(h, 0.0)
    # Output layer: Linear, no activation (matches QNetwork.forward)
    out = jnp.dot(h.astype(w2_ref.dtype), w2_ref[...],
                  preferred_element_type=jnp.float32) + b2_ref[...]
    out_ref[...] = out.astype(out_ref.dtype)


def qnetwork_forward(x, params, *, block_batch=256, compute_dtype=jnp.bfloat16):
    """Fused 3-layer MLP forward.  x: [batch, state_size] f32.  Returns [batch, action_size] f32."""
    (w0, b0), (w1, b1), (w2, b2) = params
    batch, state_size = x.shape
    h1, h2, action_size = w0.shape[1], w1.shape[1], w2.shape[1]

    # Lane-dense padded widths (zero padding is exact: ReLU(0)=0, zero columns -> zero outputs).
    h1p = _round_up(h1, LANE)
    h2p = _round_up(h2, LANE)
    ap = _round_up(action_size, LANE)

    # Batch tiling: block rows must be a multiple of 8; pad batch to a whole number of blocks.
    block_b = min(block_batch, _round_up(batch, 8))
    bp = _round_up(batch, block_b)

    def pad_to(a, shape):
        return jnp.pad(a, [(0, t - s) for s, t in zip(a.shape, shape)])

    xp = pad_to(x, (bp, state_size)).astype(compute_dtype)
    w0p = pad_to(w0, (state_size, h1p)).astype(compute_dtype)
    w1p = pad_to(w1, (h1p, h2p)).astype(compute_dtype)
    w2p = pad_to(w2, (h2p, ap)).astype(compute_dtype)
    # Biases stay f32 (added after f32 accumulation; also keeps v5e's no-bf16 VPU happy).
    b0p = pad_to(b0, (1, h1p)).astype(jnp.float32)
    b1p = pad_to(b1, (1, h2p)).astype(jnp.float32)
    b2p = pad_to(b2, (1, ap)).astype(jnp.float32)

    grid = (bp // block_b,)

    def const_spec(arr):
        # Constant block index -> weights/biases stay resident in VMEM across grid steps.
        return pl.BlockSpec(arr.shape, lambda i: (0,) * arr.ndim)

    flops = 2 * bp * (state_size * h1p + h1p * h2p + h2p * ap)
    bytes_accessed = (
        xp.size * xp.dtype.itemsize
        + sum(a.size * a.dtype.itemsize for a in (w0p, b0p, w1p, b1p, w2p, b2p))
        + bp * ap * 4  # f32 output
    )
    cost = pl.CostEstimate(flops=flops, transcendentals=0, bytes_accessed=bytes_accessed)

    out_padded = pl.pallas_call(
        qnetwork_mlp_kernel,
        out_shape=jax.ShapeDtypeStruct((bp, ap), jnp.float32),
        grid=grid,
        in_specs=[
            pl.BlockSpec((block_b, state_size), lambda i: (i, 0)),
            const_spec(w0p), const_spec(b0p),
            const_spec(w1p), const_spec(b1p),
            const_spec(w2p), const_spec(b2p),
        ],
        out_specs=pl.BlockSpec((block_b, ap), lambda i: (i, 0)),
        compiler_params=pltpu.CompilerParams(dimension_semantics=("parallel",)),
        cost_estimate=cost,
    )(xp, w0p, b0p, w1p, b1p, w2p, b2p)

    # Slice the real batch rows and Q-value columns back out (padded Q-values never escape).
    return out_padded[:batch, :action_size]


def init_params(key, state_size, hidden1, hidden2, action_size):
    """Deterministic synthetic parameters (same shapes nn.Linear would create, stored transposed)."""
    ks = jax.random.split(key, 6)
    scale = 0.1
    w0 = scale * jax.random.normal(ks[0], (state_size, hidden1), jnp.float32)
    b0 = scale * jax.random.normal(ks[1], (1, hidden1), jnp.float32)
    w1 = scale * jax.random.normal(ks[2], (hidden1, hidden2), jnp.float32)
    b1 = scale * jax.random.normal(ks[3], (1, hidden2), jnp.float32)
    w2 = scale * jax.random.normal(ks[4], (hidden2, action_size), jnp.float32)
    b2 = scale * jax.random.normal(ks[5], (1, action_size), jnp.float32)
    return ((w0, b0), (w1, b1), (w2, b2))


def reference_forward(x, params, compute_dtype=jnp.bfloat16):
    """Pure-JAX reference mirroring the kernel's bf16-operand / f32-accumulate math."""
    (w0, b0), (w1, b1), (w2, b2) = params
    h = jnp.dot(x.astype(compute_dtype), w0.astype(compute_dtype),
                preferred_element_type=jnp.float32) + b0
    h = jnp.maximum(h, 0.0)
    h = jnp.dot(h.astype(compute_dtype), w1.astype(compute_dtype),
                preferred_element_type=jnp.float32) + b1
    h = jnp.maximum(h, 0.0)
    return jnp.dot(h.astype(compute_dtype), w2.astype(compute_dtype),
                   preferred_element_type=jnp.float32) + b2


if __name__ == "__main__":
    # Module-consistent layer sizes: state_size=16, two 32-node hidden layers, action_size=8.
    # Batch is taken large enough (1024, tiled 256 rows/step) that the grid pipelining and
    # the "parallel" batch axis actually do something.
    batch, state_size, hidden1, hidden2, action_size = 1024, 16, 32, 32, 8

    key = jax.random.PRNGKey(0)
    kx, kp = jax.random.split(key)
    x = jax.random.normal(kx, (batch, state_size), jnp.float32)
    params = init_params(kp, state_size, hidden1, hidden2, action_size)

    out = qnetwork_forward(x, params, block_batch=256)
    out = jax.block_until_ready(out)

    ref = reference_forward(x, params)
    assert out.shape == (batch, action_size)
    assert jnp.allclose(out, ref, atol=1e-2, rtol=1e-2), "mismatch vs reference"

    print("KERNEL_OK")
</pallas_src>

<mosaic_0001>
module attributes {stable_mosaic.version = 11 : i64} {
  func.func @qnetwork_mlp_kernel(%arg0: i32, %arg1: memref<256x16xbf16, #tpu.memory_space<vmem>>, %arg2: memref<16x128xbf16, #tpu.memory_space<vmem>>, %arg3: memref<1x128xf32, #tpu.memory_space<vmem>>, %arg4: memref<128x128xbf16, #tpu.memory_space<vmem>>, %arg5: memref<1x128xf32, #tpu.memory_space<vmem>>, %arg6: memref<128x128xbf16, #tpu.memory_space<vmem>>, %arg7: memref<1x128xf32, #tpu.memory_space<vmem>>, %arg8: memref<256x128xf32, #tpu.memory_space<vmem>>) attributes {dimension_semantics = [#tpu.dimension_semantics<parallel>], iteration_bounds = array<i64: 4>, scalar_prefetch = 0 : i64, scratch_operands = 0 : i64, tpu.core_type = #tpu.core_type<tc>, window_params = [{transform_indices = @transform_0, window_bounds = array<i64: 256, 16>}, {pipeline_mode = #tpu.pipeline_mode<synchronous>, transform_indices = @transform_1, window_bounds = array<i64: 16, 128>}, {pipeline_mode = #tpu.pipeline_mode<synchronous>, transform_indices = @transform_2, window_bounds = array<i64: 1, 128>}, {pipeline_mode = #tpu.pipeline_mode<synchronous>, transform_indices = @transform_3, window_bounds = array<i64: 128, 128>}, {pipeline_mode = #tpu.pipeline_mode<synchronous>, transform_indices = @transform_4, window_bounds = array<i64: 1, 128>}, {pipeline_mode = #tpu.pipeline_mode<synchronous>, transform_indices = @transform_5, window_bounds = array<i64: 128, 128>}, {pipeline_mode = #tpu.pipeline_mode<synchronous>, transform_indices = @transform_6, window_bounds = array<i64: 1, 128>}, {transform_indices = @transform_7, window_bounds = array<i64: 256, 128>}]} {
    %c0 = arith.constant 0 : index
    %c0_0 = arith.constant 0 : index
    %0 = vector.load %arg1[%c0, %c0_0] : memref<256x16xbf16, #tpu.memory_space<vmem>>, vector<256x16xbf16>
    %c0_1 = arith.constant 0 : index
    %c0_2 = arith.constant 0 : index
    %1 = vector.load %arg2[%c0_1, %c0_2] : memref<16x128xbf16, #tpu.memory_space<vmem>>, vector<16x128xbf16>
    %cst = arith.constant dense<0.000000e+00> : vector<256x128xf32>
    %2 = tpu.matmul %0, %1, %cst {dimension_numbers = #tpu.dot_dimension_numbers<[1], [0], [0], [1], [0, 0, 1, 1], [], []>} : vector<256x16xbf16>, vector<16x128xbf16>, vector<256x128xf32> -> vector<256x128xf32>
    %c0_3 = arith.constant 0 : index
    %c0_4 = arith.constant 0 : index
    %3 = vector.load %arg3[%c0_3, %c0_4] : memref<1x128xf32, #tpu.memory_space<vmem>>, vector<1x128xf32>
    %4 = vector.broadcast %3 : vector<1x128xf32> to vector<256x128xf32>
    %5 = arith.addf %2, %4 : vector<256x128xf32>
    %cst_5 = arith.constant 0.000000e+00 : f32
    %6 = vector.broadcast %cst_5 : f32 to vector<256x128xf32>
    %7 = arith.maximumf %5, %6 : vector<256x128xf32>
    %8 = arith.truncf %7 : vector<256x128xf32> to vector<256x128xbf16>
    %c0_6 = arith.constant 0 : index
    %c0_7 = arith.constant 0 : index
    %9 = vector.load %arg4[%c0_6, %c0_7] : memref<128x128xbf16, #tpu.memory_space<vmem>>, vector<128x128xbf16>
    %cst_8 = arith.constant dense<0.000000e+00> : vector<256x128xf32>
    %10 = tpu.matmul %8, %9, %cst_8 {dimension_numbers = #tpu.dot_dimension_numbers<[1], [0], [0], [1], [0, 0, 1, 1], [], []>} : vector<256x128xbf16>, vector<128x128xbf16>, vector<256x128xf32> -> vector<256x128xf32>
    %c0_9 = arith.constant 0 : index
    %c0_10 = arith.constant 0 : index
    %11 = vector.load %arg5[%c0_9, %c0_10] : memref<1x128xf32, #tpu.memory_space<vmem>>, vector<1x128xf32>
    %12 = vector.broadcast %11 : vector<1x128xf32> to vector<256x128xf32>
    %13 = arith.addf %10, %12 : vector<256x128xf32>
    %cst_11 = arith.constant 0.000000e+00 : f32
    %14 = vector.broadcast %cst_11 : f32 to vector<256x128xf32>
    %15 = arith.maximumf %13, %14 : vector<256x128xf32>
    %16 = arith.truncf %15 : vector<256x128xf32> to vector<256x128xbf16>
    %c0_12 = arith.constant 0 : index
    %c0_13 = arith.constant 0 : index
    %17 = vector.load %arg6[%c0_12, %c0_13] : memref<128x128xbf16, #tpu.memory_space<vmem>>, vector<128x128xbf16>
    %cst_14 = arith.constant dense<0.000000e+00> : vector<256x128xf32>
    %18 = tpu.matmul %16, %17, %cst_14 {dimension_numbers = #tpu.dot_dimension_numbers<[1], [0], [0], [1], [0, 0, 1, 1], [], []>} : vector<256x128xbf16>, vector<128x128xbf16>, vector<256x128xf32> -> vector<256x128xf32>
    %c0_15 = arith.constant 0 : index
    %c0_16 = arith.constant 0 : index
    %19 = vector.load %arg7[%c0_15, %c0_16] : memref<1x128xf32, #tpu.memory_space<vmem>>, vector<1x128xf32>
    %20 = vector.broadcast %19 : vector<1x128xf32> to vector<256x128xf32>
    %21 = arith.addf %18, %20 : vector<256x128xf32>
    %c0_17 = arith.constant 0 : index
    %c0_18 = arith.constant 0 : index
    %22 = vector.load %arg8[%c0_17, %c0_18] : memref<256x128xf32, #tpu.memory_space<vmem>>, vector<256x128xf32>
    tpu.vector_store %arg8[%c0_17, %c0_18], %21 {strides = array<i32>} : memref<256x128xf32, #tpu.memory_space<vmem>>, vector<256x128xf32>,
    return
  }
  func.func @transform_0(%arg0: i32) -> (i32, i32) {
    %c0_i32 = arith.constant 0 : i32
    %c0_i32_0 = arith.constant 0 : i32
    return %arg0, %c0_i32 : i32, i32
  }
  func.func @transform_1(%arg0: i32) -> (i32, i32) {
    %c0_i32 = arith.constant 0 : i32
    %c0_i32_0 = arith.constant 0 : i32
    %c0_i32_1 = arith.constant 0 : i32
    return %c0_i32, %c0_i32_0 : i32, i32
  }
  func.func @transform_2(%arg0: i32) -> (i32, i32) {
    %c0_i32 = arith.constant 0 : i32
    %c0_i32_0 = arith.constant 0 : i32
    %c0_i32_1 = arith.constant 0 : i32
    return %c0_i32, %c0_i32_0 : i32, i32
  }
  func.func @transform_3(%arg0: i32) -> (i32, i32) {
    %c0_i32 = arith.constant 0 : i32
    %c0_i32_0 = arith.constant 0 : i32
    %c0_i32_1 = arith.constant 0 : i32
    return %c0_i32, %c0_i32_0 : i32, i32
  }
  func.func @transform_4(%arg0: i32) -> (i32, i32) {
    %c0_i32 = arith.constant 0 : i32
    %c0_i32_0 = arith.constant 0 : i32
    %c0_i32_1 = arith.constant 0 : i32
    return %c0_i32, %c0_i32_0 : i32, i32
  }
  func.func @transform_5(%arg0: i32) -> (i32, i32) {
    %c0_i32 = arith.constant 0 : i32
    %c0_i32_0 = arith.constant 0 : i32
    %c0_i32_1 = arith.constant 0 : i32
    return %c0_i32, %c0_i32_0 : i32, i32
  }
  func.func @transform_6(%arg0: i32) -> (i32, i32) {
    %c0_i32 = arith.constant 0 : i32
    %c0_i32_0 = arith.constant 0 : i32
    %c0_i32_1 = arith.constant 0 : i32
    return %c0_i32, %c0_i32_0 : i32, i32
  }
  func.func @transform_7(%arg0: i32) -> (i32, i32) {
    %c0_i32 = arith.constant 0 : i32
    %c0_i32_0 = arith.constant 0 : i32
    return %arg0, %c0_i32 : i32, i32
  }
}

</mosaic_0001>

<llo_original>
// kernel: tpu_custom_call.1
$region0: #{tpu_custom_call.1}
  #allocation0 [shape = 'u32[]', space=smem, size = 0x4, offset = 0x4, fixed_abs, tag = 'smem constant byte address 0x4 - core index']
  #allocation1 [shape = 'u32[72,128]{1,0:T(1,128)}', space=vmem, size = 0x9000, scoped, tag = 'internal scratch']
  %s0 = inlined_call_operand.vmem [shape: bf16[1024,16], index: 0, kind: input, shape index: {}]
  %s1 = inlined_call_operand.vmem [shape: bf16[16,128], index: 1, kind: input, shape index: {}]
  %s2 = inlined_call_operand.vmem [shape: f32[1,128], index: 2, kind: input, shape index: {}]
  %s3 = inlined_call_operand.vmem [shape: bf16[128,128], index: 3, kind: input, shape index: {}]
  %s4 = inlined_call_operand.vmem [shape: f32[1,128], index: 4, kind: input, shape index: {}]
  %s5 = inlined_call_operand.vmem [shape: bf16[128,128], index: 5, kind: input, shape index: {}]
  %s6 = inlined_call_operand.vmem [shape: f32[1,128], index: 6, kind: input, shape index: {}]
  %s7 = inlined_call_operand.hbm [shape: f32[1024,128], index: 7, kind: output, shape index: {}]
  %s8 = sld [smem:[#allocation0]]
  $region61: #{tpu_custom_call.1} parent=0
    _
  %s10 = ssub.s32 1, %s8
  %s11 = scalar_select 0, %s10, %s8
  $region1: #{tpu_custom_call.1} parent=0
    #allocation2 [shape = 'u8[262144]{0}', space=vmem, size = 0x40000, scoped, tag = 'output window, operand 0']
    #allocation3 [shape = 's32[2]{0}', space=sflag, size = 0x8, scoped, tag = 'scoped memory for tpu_custom_call.1']
    %12 = vsyncpa [#allocation3], 0
    %s13 = scalar_lea.sflag [#allocation3], 1
    %14 = vsyncpa %s13, 0
    loop: start=0, step=1, limit=6
    $region2: #{tpu_custom_call.1} parent=1 // loop_pre_header
      _
    $region3: #{tpu_custom_call.1} parent=1 // loop_header
      %s16 = sphi 0, %s20
      %p17 = scmp.ge.s32.totalorder %s16, 6
      %s26 = sphi 0, %s28
      %s29 = sphi 0, %s26
      %s30 = sphi 0, %s29
      %s46 = sphi 0, %s30
      %s50 = sphi 0, %s50
      %s52 = sphi 0, %s50
      %s53 = sphi 0, %s52
      %s67 = sphi 0, %s53
      %s71 = sphi 0, %s71
      %s73 = sphi 0, %s71
      %s74 = sphi 0, %s73
      %s88 = sphi 0, %s74
      %s92 = sphi 0, %s92
      %s94 = sphi 0, %s92
      %s95 = sphi 0, %s94
      %s109 = sphi 0, %s95
      %s113 = sphi 0, %s113
      %s115 = sphi 0, %s113
      %s116 = sphi 0, %s115
      %s130 = sphi 0, %s116
      %s134 = sphi 0, %s134
      %s136 = sphi 0, %s134
      %s137 = sphi 0, %s136
      %s151 = sphi 0, %s137
      %s155 = sphi 0, %s155
      %s157 = sphi 0, %s155
      %s158 = sphi 0, %s157
      %s172 = sphi 0, %s158
      %s178 = sphi 0, %s180
      %s181 = sphi 0, %s178
      %s182 = sphi 0, %s181
      %s198 = sphi 0, %s182
    $region4: #{tpu_custom_call.1} parent=1 // loop_header_branch
      %19 = sbr.rel (%p17) target = $region8
    $region5: #{tpu_custom_call.1} parent=1 // loop_body
      %s21 = ssub.s32 %s16, 1
      %s22 = ssub.s32 %s16, 2
      %s23 = sadd.s32 %s16, 1
      %s24 = ssub.s32 %s16, %s23
      %p25 = scmp.eq.s32.totalorder %s24, 0
      %s27 = sadd.s32 %s26, 1
      %s28 = scalar_select %p25, %s26, %s27
      %p31 = pneg %p25
      %p32 = scmp.eq.s32.totalorder %s16, 3
      %p33 = por %p31, %p32
      %p34 = scmp.ne.s32.totalorder %s26, %s29
      %p35 = scmp.eq.s32.totalorder %s16, 0
      %p36 = por %p34, %p35
      %p37 = scmp.ne.s32.totalorder %s26, %s29
      %p38 = scmp.eq.s32.totalorder %s21, 3
      %p39 = por %p37, %p38
      %p40 = scmp.ne.s32.totalorder %s29, %s30
      %p41 = scmp.eq.s32.totalorder %s21, 0
      %p42 = por %p40, %p41
      %p43 = scmp.ne.s32.totalorder %s29, %s30
      %p44 = scmp.eq.s32.totalorder %s22, 3
      %p45 = por %p43, %p44
      %p47 = scmp.ne.s32.totalorder %s30, %s46
      %p48 = scmp.eq.s32.totalorder %s22, 0
      %p49 = por %p47, %p48
      %s51 = sadd.s32 %s50, 1
      %p54 = scmp.eq.s32.totalorder %s16, 3
      %p55 = scmp.ne.s32.totalorder %s50, %s52
      %p56 = scmp.eq.s32.totalorder %s16, 0
      %p57 = por %p55, %p56
      %p58 = scmp.ne.s32.totalorder %s50, %s52
      %p59 = scmp.eq.s32.totalorder %s21, 3
      %p60 = por %p58, %p59
      %p61 = scmp.ne.s32.totalorder %s52, %s53
      %p62 = scmp.eq.s32.totalorder %s21, 0
      %p63 = por %p61, %p62
      %p64 = scmp.ne.s32.totalorder %s52, %s53
      %p65 = scmp.eq.s32.totalorder %s22, 3
      %p66 = por %p64, %p65
      %p68 = scmp.ne.s32.totalorder %s53, %s67
      %p69 = scmp.eq.s32.totalorder %s22, 0
      %p70 = por %p68, %p69
      %s72 = sadd.s32 %s71, 1
      %p75 = scmp.eq.s32.totalorder %s16, 3
      %p76 = scmp.ne.s32.totalorder %s71, %s73
      %p77 = scmp.eq.s32.totalorder %s16, 0
      %p78 = por %p76, %p77
      %p79 = scmp.ne.s32.totalorder %s71, %s73
      %p80 = scmp.eq.s32.totalorder %s21, 3
      %p81 = por %p79, %p80
      %p82 = scmp.ne.s32.totalorder %s73, %s74
      %p83 = scmp.eq.s32.totalorder %s21, 0
      %p84 = por %p82, %p83
      %p85 = scmp.ne.s32.totalorder %s73, %s74
      %p86 = scmp.eq.s32.totalorder %s22, 3
      %p87 = por %p85, %p86
      %p89 = scmp.ne.s32.totalorder %s74, %s88
      %p90 = scmp.eq.s32.totalorder %s22, 0
      %p91 = por %p89, %p90
      %s93 = sadd.s32 %s92, 1
      %p96 = scmp.eq.s32.totalorder %s16, 3
      %p97 = scmp.ne.s32.totalorder %s92, %s94
      %p98 = scmp.eq.s32.totalorder %s16, 0
      %p99 = por %p97, %p98
      %p100 = scmp.ne.s32.totalorder %s92, %s94
      %p101 = scmp.eq.s32.totalorder %s21, 3
      %p102 = por %p100, %p101
      %p103 = scmp.ne.s32.totalorder %s94, %s95
      %p104 = scmp.eq.s32.totalorder %s21, 0
      %p105 = por %p103, %p104
      %p106 = scmp.ne.s32.totalorder %s94, %s95
      %p107 = scmp.eq.s32.totalorder %s22, 3
      %p108 = por %p106, %p107
      %p110 = scmp.ne.s32.totalorder %s95, %s109
      %p111 = scmp.eq.s32.totalorder %s22, 0
      %p112 = por %p110, %p111
      %s114 = sadd.s32 %s113, 1
      %p117 = scmp.eq.s32.totalorder %s16, 3
      %p118 = scmp.ne.s32.totalorder %s113, %s115
      %p119 = scmp.eq.s32.totalorder %s16, 0
      %p120 = por %p118, %p119
      %p121 = scmp.ne.s32.totalorder %s113, %s115
      %p122 = scmp.eq.s32.totalorder %s21, 3
      %p123 = por %p121, %p122
      %p124 = scmp.ne.s32.totalorder %s115, %s116
      %p125 = scmp.eq.s32.totalorder %s21, 0
      %p126 = por %p124, %p125
      %p127 = scmp.ne.s32.totalorder %s115, %s116
      %p128 = scmp.eq.s32.totalorder %s22, 3
      %p129 = por %p127, %p128
      %p131 = scmp.ne.s32.totalorder %s116, %s130
      %p132 = scmp.eq.s32.totalorder %s22, 0
      %p133 = por %p131, %p132
      %s135 = sadd.s32 %s134, 1
      %p138 = scmp.eq.s32.totalorder %s16, 3
      %p139 = scmp.ne.s32.totalorder %s134, %s136
      %p140 = scmp.eq.s32.totalorder %s16, 0
      %p141 = por %p139, %p140
      %p142 = scmp.ne.s32.totalorder %s134, %s136
      %p143 = scmp.eq.s32.totalorder %s21, 3
      %p144 = por %p142, %p143
      %p145 = scmp.ne.s32.totalorder %s136, %s137
      %p146 = scmp.eq.s32.totalorder %s21, 0
      %p147 = por %p145, %p146
      %p148 = scmp.ne.s32.totalorder %s136, %s137
      %p149 = scmp.eq.s32.totalorder %s22, 3
      %p150 = por %p148, %p149
      %p152 = scmp.ne.s32.totalorder %s137, %s151
      %p153 = scmp.eq.s32.totalorder %s22, 0
      %p154 = por %p152, %p153
      %s156 = sadd.s32 %s155, 1
      %p159 = scmp.eq.s32.totalorder %s16, 3
      %p160 = scmp.ne.s32.totalorder %s155, %s157
      %p161 = scmp.eq.s32.totalorder %s16, 0
      %p162 = por %p160, %p161
      %p163 = scmp.ne.s32.totalorder %s155, %s157
      %p164 = scmp.eq.s32.totalorder %s21, 3
      %p165 = por %p163, %p164
      %p166 = scmp.ne.s32.totalorder %s157, %s158
      %p167 = scmp.eq.s32.totalorder %s21, 0
      %p168 = por %p166, %p167
      %p169 = scmp.ne.s32.totalorder %s157, %s158
      %p170 = scmp.eq.s32.totalorder %s22, 3
      %p171 = por %p169, %p170
      %p173 = scmp.ne.s32.totalorder %s158, %s172
      %p174 = scmp.eq.s32.totalorder %s22, 0
      %p175 = por %p173, %p174
      %s176 = ssub.s32 %s16, %s23
      %p177 = scmp.eq.s32.totalorder %s176, 0
      %s179 = sadd.s32 %s178, 1
      %s180 = scalar_select %p177, %s178, %s179
      %p183 = pneg %p177
      %p184 = scmp.eq.s32.totalorder %s16, 3
      %p185 = por %p183, %p184
      %p186 = scmp.ne.s32.totalorder %s178, %s181
      %p187 = scmp.eq.s32.totalorder %s16, 0
      %p188 = por %p186, %p187
      %p189 = scmp.ne.s32.totalorder %s178, %s181
      %p190 = scmp.eq.s32.totalorder %s21, 3
      %p191 = por %p189, %p190
      %p192 = scmp.ne.s32.totalorder %s181, %s182
      %p193 = scmp.eq.s32.totalorder %s21, 0
      %p194 = por %p192, %p193
      %p195 = scmp.ne.s32.totalorder %s181, %s182
      %p196 = scmp.eq.s32.totalorder %s22, 3
      %p197 = por %p195, %p196
      %p199 = scmp.ne.s32.totalorder %s182, %s198
      %p200 = scmp.eq.s32.totalorder %s22, 0
      %p201 = por %p199, %p200
      %p202 = scmp.le.s32.totalorder 1, %s16
      %p203 = scmp.lt.s32.totalorder %s16, 5
      %p204 = pnand %p202, %p203
      %p205 = pneg %p204
      // Predicated region
      $region9: #{tpu_custom_call.1} parent=5 // pred_check
        _
      $region10: #{tpu_custom_call.1} parent=5 // pred_check_branch
        %207 = sbr.rel (%p204) target = $region12
      $region11: #{tpu_custom_call.1} parent=5 // pred_region
        %s208 = ssub.s32 %s16, 1
        // Predicated region
        $region13: #{tpu_custom_call.1} parent=11 // pred_check
          %p209 = pneg %p63
        $region14: #{tpu_custom_call.1} parent=11 // pred_check_branch
          %211 = sbr.rel (%p209) target = $region16
        $region15: #{tpu_custom_call.1} parent=11 // pred_region
          _
        $region16: #{tpu_custom_call.1} parent=11 // pred_fallthru
          _
        // Predicated region
        $region17: #{tpu_custom_call.1} parent=11 // pred_check
          %p212 = pneg %p84
        $region18: #{tpu_custom_call.1} parent=11 // pred_check_branch
          %214 = sbr.rel (%p212) target = $region20
        $region19: #{tpu_custom_call.1} parent=11 // pred_region
          _
        $region20: #{tpu_custom_call.1} parent=11 // pred_fallthru
          _
        // Predicated region
        $region21: #{tpu_custom_call.1} parent=11 // pred_check
          %p215 = pneg %p105
        $region22: #{tpu_custom_call.1} parent=11 // pred_check_branch
          %217 = sbr.rel (%p215) target = $region24
        $region23: #{tpu_custom_call.1} parent=11 // pred_region
          _
        $region24: #{tpu_custom_call.1} parent=11 // pred_fallthru
          _
        // Predicated region
        $region25: #{tpu_custom_call.1} parent=11 // pred_check
          %p218 = pneg %p126
        $region26: #{tpu_custom_call.1} parent=11 // pred_check_branch
          %220 = sbr.rel (%p218) target = $region28
        $region27: #{tpu_custom_call.1} parent=11 // pred_region
          _
        $region28: #{tpu_custom_call.1} parent=11 // pred_fallthru
          _
        // Predicated region
        $region29: #{tpu_custom_call.1} parent=11 // pred_check
          %p221 = pneg %p147
        $region30: #{tpu_custom_call.1} parent=11 // pred_check_branch
          %223 = sbr.rel (%p221) target = $region32
        $region31: #{tpu_custom_call.1} parent=11 // pred_region
          _
        $region32: #{tpu_custom_call.1} parent=11 // pred_fallthru
          _
        // Predicated region
        $region33: #{tpu_custom_call.1} parent=11 // pred_check
          %p224 = pneg %p168
        $region34: #{tpu_custom_call.1} parent=11 // pred_check_branch
          %226 = sbr.rel (%p224) target = $region36
        $region35: #{tpu_custom_call.1} parent=11 // pred_region
          _
        $region36: #{tpu_custom_call.1} parent=11 // pred_fallthru
          _
      $region12: #{tpu_custom_call.1} parent=5 // pred_fallthru
        _
      %p227 = scmp.lt.s32.totalorder %s16, 4
      // Predicated region
      $region37: #{tpu_custom_call.1} parent=5 // pred_check
        %p228 = pneg %p227
      $region38: #{tpu_custom_call.1} parent=5 // pred_check_branch
        %230 = sbr.rel (%p228) target = $region40
      $region39: #{tpu_custom_call.1} parent=5 // pred_region
        // Predicated region
        $region41: #{tpu_custom_call.1} parent=39 // pred_check
          %p231 = pneg %p36
        $region42: #{tpu_custom_call.1} parent=39 // pred_check_branch
          %233 = sbr.rel (%p231) target = $region44
        $region43: #{tpu_custom_call.1} parent=39 // pred_region
          %s234 = smul.u32 32, %s16
          %p235 = scmp.lt.s32.totalorder %s234, 127
          %s236 = scalar_select %p235, %s234, 127
          %s237 = smul.addr %s236, 4
          %s238 = scalar_lea.vmem %s0, %s237
          %s239 = smul.u32 32, %s16
        $region44: #{tpu_custom_call.1} parent=39 // pred_fallthru
          _
      $region40: #{tpu_custom_call.1} parent=5 // pred_fallthru
        _
      %p240 = scmp.le.s32.totalorder 1, %s16
      %p241 = scmp.lt.s32.totalorder %s16, 5
      %p242 = pnand %p240, %p241
      %p243 = pneg %p242
      // Predicated region
      $region45: #{tpu_custom_call.1} parent=5 // pred_check
        _
      $region46: #{tpu_custom_call.1} parent=5 // pred_check_branch
        %245 = sbr.rel (%p242) target = $region48
      $region47: #{tpu_custom_call.1} parent=5 // pred_region
        %s246 = ssub.s32 %s16, 1
        %s247 = smul.u32 32, %s21
        %p248 = scmp.lt.s32.totalorder %s247, 127
        %s249 = scalar_select %p248, %s247, 127
        %s250 = smul.addr %s249, 4
        %s251 = scalar_lea.vmem %s0, %s250
        %p252 = pneg %p42
        %p253 = pneg %p39
        %p254 = pneg %p63
        %p255 = pneg %p60
        %p256 = pneg %p84
        %p257 = pneg %p81
        %p258 = pneg %p105
        %p259 = pneg %p102
        %p260 = pneg %p126
        %p261 = pneg %p123
        %p262 = pneg %p147
        %p263 = pneg %p144
        %p264 = pneg %p168
        %p265 = pneg %p165
        %p266 = pneg %p194
        %p267 = pneg %p191
        %s268 = sand.u32 %s181, 1
        %s269 = scalar_lea.sflag [#allocation3], %s268
        %s270 = sand.u32 %s181, 1
        %s271 = smul.addr %s270, 256
        %s272 = scalar_lea.vmem [#allocation2], %s271
        %s273 = smul.u32 32, %s21
        %p274 = scmp.lt.s32.totalorder %s273, 127
        %s275 = scalar_select %p274, %s273, 127
        %s276 = smul.addr %s275, 4
        %s277 = scalar_lea.vmem %s0, %s276
        %s278 = smul.u32 32, %s21
        %s279 = smul.u32 32, %s21
        %v281 = vld [vmem:[%s277] sm:$0xf]
        %v282 = vld [vmem:[%s277 + $0x4] sm:$0xf]
        %v283 = vld [vmem:[%s277 + $0x8] sm:$0xf]
        %v284 = vld [vmem:[%s277 + $0xc] sm:$0xf]
        %v285 = vld [vmem:[%s277 + $0x10] sm:$0xf]
        %v286 = vld [vmem:[%s277 + $0x14] sm:$0xf]
        %v287 = vld [vmem:[%s277 + $0x18] sm:$0xf]
        %v288 = vld [vmem:[%s277 + $0x1c] sm:$0xf]
        %v289 = vld [vmem:[%s277 + $0x20] sm:$0xf]
        %v290 = vld [vmem:[%s277 + $0x24] sm:$0xf]
        %v291 = vld [vmem:[%s277 + $0x28] sm:$0xf]
        %v292 = vld [vmem:[%s277 + $0x2c] sm:$0xf]
        %v293 = vld [vmem:[%s277 + $0x30] sm:$0xf]
        %v294 = vld [vmem:[%s277 + $0x34] sm:$0xf]
        %v295 = vld [vmem:[%s277 + $0x38] sm:$0xf]
        %v296 = vld [vmem:[%s277 + $0x3c] sm:$0xf]
        %v297 = vld [vmem:[%s277 + $0x40] sm:$0xf]
        %v298 = vld [vmem:[%s277 + $0x44] sm:$0xf]
        %v299 = vld [vmem:[%s277 + $0x48] sm:$0xf]
        %v300 = vld [vmem:[%s277 + $0x4c] sm:$0xf]
        %v301 = vld [vmem:[%s277 + $0x50] sm:$0xf]
        %v302 = vld [vmem:[%s277 + $0x54] sm:$0xf]
        %v303 = vld [vmem:[%s277 + $0x58] sm:$0xf]
        %v304 = vld [vmem:[%s277 + $0x5c] sm:$0xf]
        %v305 = vld [vmem:[%s277 + $0x60] sm:$0xf]
        %v306 = vld [vmem:[%s277 + $0x64] sm:$0xf]
        %v307 = vld [vmem:[%s277 + $0x68] sm:$0xf]
        %v308 = vld [vmem:[%s277 + $0x6c] sm:$0xf]
        %v309 = vld [vmem:[%s277 + $0x70] sm:$0xf]
        %v310 = vld [vmem:[%s277 + $0x74] sm:$0xf]
        %v311 = vld [vmem:[%s277 + $0x78] sm:$0xf]
        %v312 = vld [vmem:[%s277 + $0x7c] sm:$0xf]
        %v313 = vld [vmem:[%s1] sm:$0xf]
        %v314 = vld [vmem:[%s1 + $0x4] sm:$0xf]
        %v315 = vld [vmem:[%s2] sm:$0x1]
        %v317 = vperm.slane %v315, 0
        %v351 = vunpack.c.l.b16 %v281
        %v352 = vunpack.c.l.b16 %v282
        %v353 = vunpack.c.l.b16 %v283
        %v354 = vunpack.c.l.b16 %v284
        %v355 = vunpack.c.l.b16 %v285
        %v356 = vunpack.c.l.b16 %v286
        %v357 = vunpack.c.l.b16 %v287
        %v358 = vunpack.c.l.b16 %v288
        %v359 = vunpack.c.l.b16 %v289
        %v360 = vunpack.c.l.b16 %v290
        %v361 = vunpack.c.l.b16 %v291
        %v362 = vunpack.c.l.b16 %v292
        %v363 = vunpack.c.l.b16 %v293
        %v364 = vunpack.c.l.b16 %v294
        %v365 = vunpack.c.l.b16 %v295
        %v366 = vunpack.c.l.b16 %v296
        %v367 = vunpack.c.l.b16 %v297
        %v368 = vunpack.c.l.b16 %v298
        %v369 = vunpack.c.l.b16 %v299
        %v370 = vunpack.c.l.b16 %v300
        %v371 = vunpack.c.l.b16 %v301
        %v372 = vunpack.c.l.b16 %v302
        %v373 = vunpack.c.l.b16 %v303
        %v374 = vunpack.c.l.b16 %v304
        %v375 = vunpack.c.l.b16 %v305
        %v376 = vunpack.c.l.b16 %v306
        %v377 = vunpack.c.l.b16 %v307
        %v378 = vunpack.c.l.b16 %v308
        %v379 = vunpack.c.l.b16 %v309
        %v380 = vunpack.c.l.b16 %v310
        %v381 = vunpack.c.l.b16 %v311
        %v382 = vunpack.c.l.b16 %v312
        %v383 = vpack.c.b16 %v352, %v351
        %v384 = vpack.c.b16 %v354, %v353
        %v385 = vpack.c.b16 %v356, %v355
        %v386 = vpack.c.b16 %v358, %v357
        %v387 = vpack.c.b16 %v360, %v359
        %v388 = vpack.c.b16 %v362, %v361
        %v389 = vpack.c.b16 %v364, %v363
        %v390 = vpack.c.b16 %v366, %v365
        %v391 = vpack.c.b16 %v368, %v367
        %v392 = vpack.c.b16 %v370, %v369
        %v393 = vpack.c.b16 %v372, %v371
        %v394 = vpack.c.b16 %v374, %v373
        %v395 = vpack.c.b16 %v376, %v375
        %v396 = vpack.c.b16 %v378, %v377
        %v397 = vpack.c.b16 %v380, %v379
        %v398 = vpack.c.b16 %v382, %v381
        %v401 = vunpack.c.l.b16 %v313
        %v402 = vunpack.c.l.b16 %v314
        %v403 = vpack.c.b16 %v402, %v401
        %vm405 = vcmask 130048
        %v407 = vsel %vm405, %v383, 0
        %v410 = vsel %vm405, %v384, 0
        %v413 = vsel %vm405, %v385, 0
        %v416 = vsel %vm405, %v386, 0
        %v419 = vsel %vm405, %v387, 0
        %v422 = vsel %vm405, %v388, 0
        %v425 = vsel %vm405, %v389, 0
        %v428 = vsel %vm405, %v390, 0
        %v431 = vsel %vm405, %v391, 0
        %v434 = vsel %vm405, %v392, 0
        %v437 = vsel %vm405, %v393, 0
        %v440 = vsel %vm405, %v394, 0
        %v443 = vsel %vm405, %v395, 0
        %v446 = vsel %vm405, %v396, 0
        %v449 = vsel %vm405, %v397, 0
        %v452 = vsel %vm405, %v398, 0
        %454 = vmatpush.bf16.msra.mxu0 0
        %455 = vmatpush.bf16.msra.mxu0 0
        %456 = vmatpush.bf16.msra.mxu0 0
        %457 = vmatpush.bf16.msra.mxu0 0
        %458 = vmatpush.bf16.msra.mxu0 0
        %459 = vmatpush.bf16.msra.mxu0 0
        %460 = vmatpush.bf16.msra.mxu0 0
        %461 = vmatpush.bf16.msra.mxu0 %v403
        %462 = vmatmul.bf16.gmra.mxu0 %v407
        %v463 = vpop.f32.mrf.mxu0
        %v464 = vadd.f32 %v317, %v463
        %v465 = vpop.f32.mrf.mxu0
        %v466 = vadd.f32 %v317, %v465
        %467 = vmatmul.bf16.gmra.mxu0 %v410
        %v468 = vpop.f32.mrf.mxu0
        %v469 = vadd.f32 %v317, %v468
        %v470 = vpop.f32.mrf.mxu0
        %v471 = vadd.f32 %v317, %v470
        %472 = vmatmul.bf16.gmra.mxu0 %v413
        %v473 = vpop.f32.mrf.mxu0
        %v474 = vadd.f32 %v317, %v473
        %v475 = vpop.f32.mrf.mxu0
        %v476 = vadd.f32 %v317, %v475
        %477 = vmatmul.bf16.gmra.mxu0 %v416
        %v478 = vpop.f32.mrf.mxu0
        %v479 = vadd.f32 %v317, %v478
        %v480 = vpop.f32.mrf.mxu0
        %v481 = vadd.f32 %v317, %v480
        %482 = vmatmul.bf16.gmra.mxu0 %v419
        %v483 = vpop.f32.mrf.mxu0
        %v484 = vadd.f32 %v317, %v483
        %v485 = vpop.f32.mrf.mxu0
        %v486 = vadd.f32 %v317, %v485
        %487 = vmatmul.bf16.gmra.mxu0 %v422
        %v488 = vpop.f32.mrf.mxu0
        %v489 = vadd.f32 %v317, %v488
        %v490 = vpop.f32.mrf.mxu0
        %v491 = vadd.f32 %v317, %v490
        %492 = vmatmul.bf16.gmra.mxu0 %v425
        %v493 = vpop.f32.mrf.mxu0
        %v494 = vadd.f32 %v317, %v493
        %v495 = vpop.f32.mrf.mxu0
        %v496 = vadd.f32 %v317, %v495
        %497 = vmatmul.bf16.gmra.mxu0 %v428
        %v498 = vpop.f32.mrf.mxu0
        %v499 = vadd.f32 %v317, %v498
        %v500 = vpop.f32.mrf.mxu0
        %v501 = vadd.f32 %v317, %v500
        %502 = vmatmul.bf16.gmra.mxu0 %v431
        %v503 = vpop.f32.mrf.mxu0
        %v504 = vadd.f32 %v317, %v503
        %v505 = vpop.f32.mrf.mxu0
        %v506 = vadd.f32 %v317, %v505
        %507 = vmatmul.bf16.gmra.mxu0 %v434
        %v508 = vpop.f32.mrf.mxu0
        %v509 = vadd.f32 %v317, %v508
        %v510 = vpop.f32.mrf.mxu0
        %v511 = vadd.f32 %v317, %v510
        %512 = vmatmul.bf16.gmra.mxu0 %v437
        %v513 = vpop.f32.mrf.mxu0
        %v514 = vadd.f32 %v317, %v513
        %v515 = vpop.f32.mrf.mxu0
        %v516 = vadd.f32 %v317, %v515
        %517 = vmatmul.bf16.gmra.mxu0 %v440
        %v518 = vpop.f32.mrf.mxu0
        %v519 = vadd.f32 %v317, %v518
        %v520 = vpop.f32.mrf.mxu0
        %v521 = vadd.f32 %v317, %v520
        %522 = vmatmul.bf16.gmra.mxu0 %v443
        %v523 = vpop.f32.mrf.mxu0
        %v524 = vadd.f32 %v317, %v523
        %v525 = vpop.f32.mrf.mxu0
        %v526 = vadd.f32 %v317, %v525
        %527 = vmatmul.bf16.gmra.mxu0 %v446
        %v528 = vpop.f32.mrf.mxu0
        %v529 = vadd.f32 %v317, %v528
        %v530 = vpop.f32.mrf.mxu0
        %v531 = vadd.f32 %v317, %v530
        %532 = vmatmul.bf16.gmra.mxu0 %v449
        %v533 = vpop.f32.mrf.mxu0
        %v534 = vadd.f32 %v317, %v533
        %v535 = vpop.f32.mrf.mxu0
        %v536 = vadd.f32 %v317, %v535
        %537 = vmatmul.bf16.gmra.mxu0 %v452
        %v538 = vpop.f32.mrf.mxu0
        %v539 = vadd.f32 %v317, %v538
        %v540 = vpop.f32.mrf.mxu0
        %v541 = vadd.f32 %v317, %v540
        %542 = vdwg.mxu0
        %v543 = vmax.f32 %v464, 0.0
        %v544 = vmax.f32 %v466, 0.0
        %v545 = vmax.f32 %v469, 0.0
        %v546 = vmax.f32 %v471, 0.0
        %v547 = vmax.f32 %v474, 0.0
        %v548 = vmax.f32 %v476, 0.0
        %v549 = vmax.f32 %v479, 0.0
        %v550 = vmax.f32 %v481, 0.0
        %v551 = vmax.f32 %v484, 0.0
        %v552 = vmax.f32 %v486, 0.0
        %v553 = vmax.f32 %v489, 0.0
        %v554 = vmax.f32 %v491, 0.0
        %v555 = vmax.f32 %v494, 0.0
        %v556 = vmax.f32 %v496, 0.0
        %v557 = vmax.f32 %v499, 0.0
        %v558 = vmax.f32 %v501, 0.0
        %v559 = vmax.f32 %v504, 0.0
        %v560 = vmax.f32 %v506, 0.0
        %v561 = vmax.f32 %v509, 0.0
        %v562 = vmax.f32 %v511, 0.0
        %v563 = vmax.f32 %v514, 0.0
        %v564 = vmax.f32 %v516, 0.0
        %v565 = vmax.f32 %v519, 0.0
        %v566 = vmax.f32 %v521, 0.0
        %v567 = vmax.f32 %v524, 0.0
        %v568 = vmax.f32 %v526, 0.0
        %v569 = vmax.f32 %v529, 0.0
        %v570 = vmax.f32 %v531, 0.0
        %v571 = vmax.f32 %v534, 0.0
        %v572 = vmax.f32 %v536, 0.0
        %v573 = vmax.f32 %v539, 0.0
        %v574 = vmax.f32 %v541, 0.0
        %v575 = vpack.c.bf16 %v544, %v543
        %v576 = vpack.c.bf16 %v546, %v545
        %v577 = vpack.c.bf16 %v548, %v547
        %v578 = vpack.c.bf16 %v550, %v549
        %v579 = vpack.c.bf16 %v552, %v551
        %v580 = vpack.c.bf16 %v554, %v553
        %v581 = vpack.c.bf16 %v556, %v555
        %v582 = vpack.c.bf16 %v558, %v557
        %v583 = vpack.c.bf16 %v560, %v559
        %v584 = vpack.c.bf16 %v562, %v561
        %v585 = vpack.c.bf16 %v564, %v563
        %v586 = vpack.c.bf16 %v566, %v565
        %v587 = vpack.c.bf16 %v568, %v567
        %v588 = vpack.c.bf16 %v570, %v569
        %v589 = vpack.c.bf16 %v572, %v571
        %v590 = vpack.c.bf16 %v574, %v573
        %v591 = vld [vmem:[%s3] sm:$0xf]
        %v592 = vld [vmem:[%s3 + $0x4] sm:$0xf]
        %v593 = vld [vmem:[%s3 + $0x8] sm:$0xf]
        %v594 = vld [vmem:[%s3 + $0xc] sm:$0xf]
        %v595 = vld [vmem:[%s3 + $0x10] sm:$0xf]
        %v596 = vld [vmem:[%s3 + $0x14] sm:$0xf]
        %v597 = vld [vmem:[%s3 + $0x18] sm:$0xf]
        %v598 = vld [vmem:[%s3 + $0x1c] sm:$0xf]
        %v599 = vld [vmem:[%s3 + $0x20] sm:$0xf]
        %v600 = vld [vmem:[%s3 + $0x24] sm:$0xf]
        %v601 = vld [vmem:[%s3 + $0x28] sm:$0xf]
        %v602 = vld [vmem:[%s3 + $0x2c] sm:$0xf]
        %v603 = vld [vmem:[%s3 + $0x30] sm:$0xf]
        %v604 = vld [vmem:[%s3 + $0x34] sm:$0xf]
        %v605 = vld [vmem:[%s3 + $0x38] sm:$0xf]
        %v606 = vld [vmem:[%s3 + $0x3c] sm:$0xf]
        %v607 = vld [vmem:[%s4] sm:$0x1]
        %v609 = vperm.slane %v607, 0
        %v627 = vunpack.c.l.b16 %v591
        %v628 = vunpack.c.l.b16 %v592
        %v629 = vunpack.c.l.b16 %v593
        %v630 = vunpack.c.l.b16 %v594
        %v631 = vunpack.c.l.b16 %v595
        %v632 = vunpack.c.l.b16 %v596
        %v633 = vunpack.c.l.b16 %v597
        %v634 = vunpack.c.l.b16 %v598
        %v635 = vunpack.c.l.b16 %v599
        %v636 = vunpack.c.l.b16 %v600
        %v637 = vunpack.c.l.b16 %v601
        %v638 = vunpack.c.l.b16 %v602
        %v639 = vunpack.c.l.b16 %v603
        %v640 = vunpack.c.l.b16 %v604
        %v641 = vunpack.c.l.b16 %v605
        %v642 = vunpack.c.l.b16 %v606
        %v643 = vpack.c.b16 %v628, %v627
        %v644 = vpack.c.b16 %v630, %v629
        %v645 = vpack.c.b16 %v632, %v631
        %v646 = vpack.c.b16 %v634, %v633
        %v647 = vpack.c.b16 %v636, %v635
        %v648 = vpack.c.b16 %v638, %v637
        %v649 = vpack.c.b16 %v640, %v639
        %v650 = vpack.c.b16 %v642, %v641
        %659 = vmatpush.bf16.msra.mxu0 %v650
        %660 = vmatpush.bf16.msra.mxu0 %v649
        %661 = vmatpush.bf16.msra.mxu0 %v648
        %662 = vmatpush.bf16.msra.mxu0 %v647
        %663 = vmatpush.bf16.msra.mxu0 %v646
        %664 = vmatpush.bf16.msra.mxu0 %v645
        %665 = vmatpush.bf16.msra.mxu0 %v644
        %666 = vmatpush.bf16.msra.mxu0 %v643
        %667 = vmatmul.bf16.gmra.mxu0 %v575
        %v668 = vpop.f32.mrf.mxu0
        %v669 = vadd.f32 %v609, %v668
        %v670 = vpop.f32.mrf.mxu0
        %v671 = vadd.f32 %v609, %v670
        %672 = vmatmul.bf16.gmra.mxu0 %v576
        %v673 = vpop.f32.mrf.mxu0
        %v674 = vadd.f32 %v609, %v673
        %v675 = vpop.f32.mrf.mxu0
        %v676 = vadd.f32 %v609, %v675
        %677 = vmatmul.bf16.gmra.mxu0 %v577
        %v678 = vpop.f32.mrf.mxu0
        %v679 = vadd.f32 %v609, %v678
        %v680 = vpop.f32.mrf.mxu0
        %v681 = vadd.f32 %v609, %v680
        %682 = vmatmul.bf16.gmra.mxu0 %v578
        %v683 = vpop.f32.mrf.mxu0
        %v684 = vadd.f32 %v609, %v683
        %v685 = vpop.f32.mrf.mxu0
        %v686 = vadd.f32 %v609, %v685
        %687 = vmatmul.bf16.gmra.mxu0 %v579
        %v688 = vpop.f32.mrf.mxu0
        %v689 = vadd.f32 %v609, %v688
        %v690 = vpop.f32.mrf.mxu0
        %v691 = vadd.f32 %v609, %v690
        %692 = vmatmul.bf16.gmra.mxu0 %v580
        %v693 = vpop.f32.mrf.mxu0
        %v694 = vadd.f32 %v609, %v693
        %v695 = vpop.f32.mrf.mxu0
        %v696 = vadd.f32 %v609, %v695
        %697 = vmatmul.bf16.gmra.mxu0 %v581
        %v698 = vpop.f32.mrf.mxu0
        %v699 = vadd.f32 %v609, %v698
        %v700 = vpop.f32.mrf.mxu0
        %v701 = vadd.f32 %v609, %v700
        %702 = vmatmul.bf16.gmra.mxu0 %v582
        %v703 = vpop.f32.mrf.mxu0
        %v704 = vadd.f32 %v609, %v703
        %v705 = vpop.f32.mrf.mxu0
        %v706 = vadd.f32 %v609, %v705
        %707 = vmatmul.bf16.gmra.mxu0 %v583
        %v708 = vpop.f32.mrf.mxu0
        %v709 = vadd.f32 %v609, %v708
        %v710 = vpop.f32.mrf.mxu0
        %v711 = vadd.f32 %v609, %v710
        %712 = vmatmul.bf16.gmra.mxu0 %v584
        %v713 = vpop.f32.mrf.mxu0
        %v714 = vadd.f32 %v609, %v713
        %v715 = vpop.f32.mrf.mxu0
        %v716 = vadd.f32 %v609, %v715
        %717 = vmatmul.bf16.gmra.mxu0 %v585
        %v718 = vpop.f32.mrf.mxu0
        %v719 = vadd.f32 %v609, %v718
        %v720 = vpop.f32.mrf.mxu0
        %v721 = vadd.f32 %v609, %v720
        %722 = vmatmul.bf16.gmra.mxu0 %v586
        %v723 = vpop.f32.mrf.mxu0
        %v724 = vadd.f32 %v609, %v723
        %v725 = vpop.f32.mrf.mxu0
        %v726 = vadd.f32 %v609, %v725
        %727 = vmatmul.bf16.gmra.mxu0 %v587
        %v728 = vpop.f32.mrf.mxu0
        %v729 = vadd.f32 %v609, %v728
        %v730 = vpop.f32.mrf.mxu0
        %v731 = vadd.f32 %v609, %v730
        %732 = vmatmul.bf16.gmra.mxu0 %v588
        %v733 = vpop.f32.mrf.mxu0
        %v734 = vadd.f32 %v609, %v733
        %v735 = vpop.f32.mrf.mxu0
        %v736 = vadd.f32 %v609, %v735
        %737 = vmatmul.bf16.gmra.mxu0 %v589
        %v738 = vpop.f32.mrf.mxu0
        %v739 = vadd.f32 %v609, %v738
        %v740 = vpop.f32.mrf.mxu0
        %v741 = vadd.f32 %v609, %v740
        %742 = vmatmul.bf16.gmra.mxu0 %v590
        %v743 = vpop.f32.mrf.mxu0
        %v744 = vadd.f32 %v609, %v743
        %v745 = vpop.f32.mrf.mxu0
        %v746 = vadd.f32 %v609, %v745
        %747 = vdwg.mxu0
        %v748 = vmax.f32 %v669, 0.0
        %v749 = vmax.f32 %v671, 0.0
        %v750 = vmax.f32 %v674, 0.0
        %v751 = vmax.f32 %v676, 0.0
        %v752 = vmax.f32 %v679, 0.0
        %v753 = vmax.f32 %v681, 0.0
        %v754 = vmax.f32 %v684, 0.0
        %v755 = vmax.f32 %v686, 0.0
        %v756 = vmax.f32 %v689, 0.0
        %v757 = vmax.f32 %v691, 0.0
        %v758 = vmax.f32 %v694, 0.0
        %v759 = vmax.f32 %v696, 0.0
        %v760 = vmax.f32 %v699, 0.0
        %v761 = vmax.f32 %v701, 0.0
        %v762 = vmax.f32 %v704, 0.0
        %v763 = vmax.f32 %v706, 0.0
        %v764 = vmax.f32 %v709, 0.0
        %v765 = vmax.f32 %v711, 0.0
        %v766 = vmax.f32 %v714, 0.0
        %v767 = vmax.f32 %v716, 0.0
        %v768 = vmax.f32 %v719, 0.0
        %v769 = vmax.f32 %v721, 0.0
        %v770 = vmax.f32 %v724, 0.0
        %v771 = vmax.f32 %v726, 0.0
        %v772 = vmax.f32 %v729, 0.0
        %v773 = vmax.f32 %v731, 0.0
        %v774 = vmax.f32 %v734, 0.0
        %v775 = vmax.f32 %v736, 0.0
        %v776 = vmax.f32 %v739, 0.0
        %v777 = vmax.f32 %v741, 0.0
        %v778 = vmax.f32 %v744, 0.0
        %v779 = vmax.f32 %v746, 0.0
        %v780 = vpack.c.bf16 %v749, %v748
        %v781 = vpack.c.bf16 %v751, %v750
        %v782 = vpack.c.bf16 %v753, %v752
        %v783 = vpack.c.bf16 %v755, %v754
        %v784 = vpack.c.bf16 %v757, %v756
        %v785 = vpack.c.bf16 %v759, %v758
        %v786 = vpack.c.bf16 %v761, %v760
        %v787 = vpack.c.bf16 %v763, %v762
        %v788 = vpack.c.bf16 %v765, %v764
        %v789 = vpack.c.bf16 %v767, %v766
        %v790 = vpack.c.bf16 %v769, %v768
        %v791 = vpack.c.bf16 %v771, %v770
        %v792 = vpack.c.bf16 %v773, %v772
        %v793 = vpack.c.bf16 %v775, %v774
        %v794 = vpack.c.bf16 %v777, %v776
        %v795 = vpack.c.bf16 %v779, %v778
        %v796 = vld [vmem:[%s5] sm:$0xf]
        %v797 = vld [vmem:[%s5 + $0x4] sm:$0xf]
        %v798 = vld [vmem:[%s5 + $0x8] sm:$0xf]
        %v799 = vld [vmem:[%s5 + $0xc] sm:$0xf]
        %v800 = vld [vmem:[%s5 + $0x10] sm:$0xf]
        %v801 = vld [vmem:[%s5 + $0x14] sm:$0xf]
        %v802 = vld [vmem:[%s5 + $0x18] sm:$0xf]
        %v803 = vld [vmem:[%s5 + $0x1c] sm:$0xf]
        %v804 = vld [vmem:[%s5 + $0x20] sm:$0xf]
        %v805 = vld [vmem:[%s5 + $0x24] sm:$0xf]
        %v806 = vld [vmem:[%s5 + $0x28] sm:$0xf]
        %v807 = vld [vmem:[%s5 + $0x2c] sm:$0xf]
        %v808 = vld [vmem:[%s5 + $0x30] sm:$0xf]
        %v809 = vld [vmem:[%s5 + $0x34] sm:$0xf]
        %v810 = vld [vmem:[%s5 + $0x38] sm:$0xf]
        %v811 = vld [vmem:[%s5 + $0x3c] sm:$0xf]
        %v812 = vld [vmem:[%s6] sm:$0x1]
        %v814 = vperm.slane %v812, 0
        %v832 = vunpack.c.l.b16 %v796
        %v833 = vunpack.c.l.b16 %v797
        %v834 = vunpack.c.l.b16 %v798
        %v835 = vunpack.c.l.b16 %v799
        %v836 = vunpack.c.l.b16 %v800
        %v837 = vunpack.c.l.b16 %v801
        %v838 = vunpack.c.l.b16 %v802
        %v839 = vunpack.c.l.b16 %v803
        %v840 = vunpack.c.l.b16 %v804
        %v841 = vunpack.c.l.b16 %v805
        %v842 = vunpack.c.l.b16 %v806
        %v843 = vunpack.c.l.b16 %v807
        %v844 = vunpack.c.l.b16 %v808
        %v845 = vunpack.c.l.b16 %v809
        %v846 = vunpack.c.l.b16 %v810
        %v847 = vunpack.c.l.b16 %v811
        %v848 = vpack.c.b16 %v833, %v832
        %v849 = vpack.c.b16 %v835, %v834
        %v850 = vpack.c.b16 %v837, %v836
        %v851 = vpack.c.b16 %v839, %v838
        %v852 = vpack.c.b16 %v841, %v840
        %v853 = vpack.c.b16 %v843, %v842
        %v854 = vpack.c.b16 %v845, %v844
        %v855 = vpack.c.b16 %v847, %v846
        %864 = vmatpush.bf16.msra.mxu0 %v855
        %865 = vmatpush.bf16.msra.mxu0 %v854
        %866 = vmatpush.bf16.msra.mxu0 %v853
        %867 = vmatpush.bf16.msra.mxu0 %v852
        %868 = vmatpush.bf16.msra.mxu0 %v851
        %869 = vmatpush.bf16.msra.mxu0 %v850
        %870 = vmatpush.bf16.msra.mxu0 %v849
        %871 = vmatpush.bf16.msra.mxu0 %v848
        %872 = vmatmul.bf16.gmra.mxu0 %v780
        %v873 = vpop.f32.mrf.mxu0
        %v874 = vadd.f32 %v814, %v873
        %v875 = vpop.f32.mrf.mxu0
        %v876 = vadd.f32 %v814, %v875
        %877 = vmatmul.bf16.gmra.mxu0 %v781
        %v878 = vpop.f32.mrf.mxu0
        %v879 = vadd.f32 %v814, %v878
        %v880 = vpop.f32.mrf.mxu0
        %v881 = vadd.f32 %v814, %v880
        %882 = vmatmul.bf16.gmra.mxu0 %v782
        %v883 = vpop.f32.mrf.mxu0
        %v884 = vadd.f32 %v814, %v883
        %v885 = vpop.f32.mrf.mxu0
        %v886 = vadd.f32 %v814, %v885
        %887 = vmatmul.bf16.gmra.mxu0 %v783
        %v888 = vpop.f32.mrf.mxu0
        %v889 = vadd.f32 %v814, %v888
        %v890 = vpop.f32.mrf.mxu0
        %v891 = vadd.f32 %v814, %v890
        %892 = vmatmul.bf16.gmra.mxu0 %v784
        %v893 = vpop.f32.mrf.mxu0
        %v894 = vadd.f32 %v814, %v893
        %v895 = vpop.f32.mrf.mxu0
        %v896 = vadd.f32 %v814, %v895
        %897 = vmatmul.bf16.gmra.mxu0 %v785
        %v898 = vpop.f32.mrf.mxu0
        %v899 = vadd.f32 %v814, %v898
        %v900 = vpop.f32.mrf.mxu0
        %v901 = vadd.f32 %v814, %v900
        %902 = vmatmul.bf16.gmra.mxu0 %v786
        %v903 = vpop.f32.mrf.mxu0
        %v904 = vadd.f32 %v814, %v903
        %v905 = vpop.f32.mrf.mxu0
        %v906 = vadd.f32 %v814, %v905
        %907 = vmatmul.bf16.gmra.mxu0 %v787
        %v908 = vpop.f32.mrf.mxu0
        %v909 = vadd.f32 %v814, %v908
        %v910 = vpop.f32.mrf.mxu0
        %v911 = vadd.f32 %v814, %v910
        %912 = vmatmul.bf16.gmra.mxu0 %v788
        %v913 = vpop.f32.mrf.mxu0
        %v914 = vadd.f32 %v814, %v913
        %v915 = vpop.f32.mrf.mxu0
        %v916 = vadd.f32 %v814, %v915
        %917 = vmatmul.bf16.gmra.mxu0 %v789
        %v918 = vpop.f32.mrf.mxu0
        %v919 = vadd.f32 %v814, %v918
        %v920 = vpop.f32.mrf.mxu0
        %v921 = vadd.f32 %v814, %v920
        %922 = vmatmul.bf16.gmra.mxu0 %v790
        %v923 = vpop.f32.mrf.mxu0
        %v924 = vadd.f32 %v814, %v923
        %v925 = vpop.f32.mrf.mxu0
        %v926 = vadd.f32 %v814, %v925
        %927 = vmatmul.bf16.gmra.mxu0 %v791
        %v928 = vpop.f32.mrf.mxu0
        %v929 = vadd.f32 %v814, %v928
        %v930 = vpop.f32.mrf.mxu0
        %v931 = vadd.f32 %v814, %v930
        %932 = vmatmul.bf16.gmra.mxu0 %v792
        %v933 = vpop.f32.mrf.mxu0
        %v934 = vadd.f32 %v814, %v933
        %v935 = vpop.f32.mrf.mxu0
        %v936 = vadd.f32 %v814, %v935
        %937 = vmatmul.bf16.gmra.mxu0 %v793
        %v938 = vpop.f32.mrf.mxu0
        %v939 = vadd.f32 %v814, %v938
        %v940 = vpop.f32.mrf.mxu0
        %v941 = vadd.f32 %v814, %v940
        %942 = vmatmul.bf16.gmra.mxu0 %v794
        %v943 = vpop.f32.mrf.mxu0
        %v944 = vadd.f32 %v814, %v943
        %v945 = vpop.f32.mrf.mxu0
        %v946 = vadd.f32 %v814, %v945
        %947 = vmatmul.bf16.gmra.mxu0 %v795
        %v948 = vpop.f32.mrf.mxu0
        %v949 = vadd.f32 %v814, %v948
        %v950 = vpop.f32.mrf.mxu0
        %v951 = vadd.f32 %v814, %v950
        %952 = vdwg.mxu0
        %953 = vst [vmem:[%s272] sm:$0xff] %v874
        %954 = vst [vmem:[%s272 + $0x8] sm:$0xff] %v876
        %955 = vst [vmem:[%s272 + $0x10] sm:$0xff] %v879
        %956 = vst [vmem:[%s272 + $0x18] sm:$0xff] %v881
        %957 = vst [vmem:[%s272 + $0x20] sm:$0xff] %v884
        %958 = vst [vmem:[%s272 + $0x28] sm:$0xff] %v886
        %959 = vst [vmem:[%s272 + $0x30] sm:$0xff] %v889
        %960 = vst [vmem:[%s272 + $0x38] sm:$0xff] %v891
        %961 = vst [vmem:[%s272 + $0x40] sm:$0xff] %v894
        %962 = vst [vmem:[%s272 + $0x48] sm:$0xff] %v896
        %963 = vst [vmem:[%s272 + $0x50] sm:$0xff] %v899
        %964 = vst [vmem:[%s272 + $0x58] sm:$0xff] %v901
        %965 = vst [vmem:[%s272 + $0x60] sm:$0xff] %v904
        %966 = vst [vmem:[%s272 + $0x68] sm:$0xff] %v906
        %967 = vst [vmem:[%s272 + $0x70] sm:$0xff] %v909
        %968 = vst [vmem:[%s272 + $0x78] sm:$0xff] %v911
        %969 = vst [vmem:[%s272 + $0x80] sm:$0xff] %v914
        %970 = vst [vmem:[%s272 + $0x88] sm:$0xff] %v916
        %971 = vst [vmem:[%s272 + $0x90] sm:$0xff] %v919
        %972 = vst [vmem:[%s272 + $0x98] sm:$0xff] %v921
        %973 = vst [vmem:[%s272 + $0xa0] sm:$0xff] %v924
        %974 = vst [vmem:[%s272 + $0xa8] sm:$0xff] %v926
        %975 = vst [vmem:[%s272 + $0xb0] sm:$0xff] %v929
        %976 = vst [vmem:[%s272 + $0xb8] sm:$0xff] %v931
        %977 = vst [vmem:[%s272 + $0xc0] sm:$0xff] %v934
        %978 = vst [vmem:[%s272 + $0xc8] sm:$0xff] %v936
        %979 = vst [vmem:[%s272 + $0xd0] sm:$0xff] %v939
        %980 = vst [vmem:[%s272 + $0xd8] sm:$0xff] %v941
        %981 = vst [vmem:[%s272 + $0xe0] sm:$0xff] %v944
        %982 = vst [vmem:[%s272 + $0xe8] sm:$0xff] %v946
        %983 = vst [vmem:[%s272 + $0xf0] sm:$0xff] %v949
        %984 = vst [vmem:[%s272 + $0xf8] sm:$0xff] %v951
        %s985 = sand.u32 %s181, 1
        %s986 = scalar_lea.sflag [#allocation3], %s985
        %s987 = sand.u32 %s181, 1
        %s988 = smul.addr %s987, 256
        %s989 = scalar_lea.vmem [#allocation2], %s988
        // Predicated region
        $region49: #{tpu_custom_call.1} parent=47 // pred_check
          %p990 = pneg %p191
        $region50: #{tpu_custom_call.1} parent=47 // pred_check_branch
          %992 = sbr.rel (%p990) target = $region52
        $region51: #{tpu_custom_call.1} parent=47 // pred_region
          %s993 = smul.u32 32, %s21
          %995 = vsyncadd %s986, 0
          %s996 = smul.addr %s993, 8
          %s997 = scalar_lea.hbm %s7, %s996
          %s998 = sshll.u32 %s989, 4
          %s999 = int_to_ptr.vmem [resolvable:$true] %s998
          %s1000 = sshll.u32 %s997, 4
          %s1001 = int_to_ptr.hbm [resolvable:$true] %s1000
          %1006 = dma.vmem_to_hbm [thread:$0]  %s999, 4096, %s1001, %s986, 128, 128, 8
        $region52: #{tpu_custom_call.1} parent=47 // pred_fallthru
          _
      $region48: #{tpu_custom_call.1} parent=5 // pred_fallthru
        _
      %p1007 = scmp.le.s32.totalorder 2, %s16
      // Predicated region
      $region53: #{tpu_custom_call.1} parent=5 // pred_check
        %p1008 = pneg %p1007
      $region54: #{tpu_custom_call.1} parent=5 // pred_check_branch
        %1010 = sbr.rel (%p1008) target = $region56
      $region55: #{tpu_custom_call.1} parent=5 // pred_region
        %s1011 = ssub.s32 %s16, 2
        // Predicated region
        $region57: #{tpu_custom_call.1} parent=55 // pred_check
          %p1012 = pneg %p197
        $region58: #{tpu_custom_call.1} parent=55 // pred_check_branch
          %1014 = sbr.rel (%p1012) target = $region60
        $region59: #{tpu_custom_call.1} parent=55 // pred_region
          %s1015 = sand.u32 %s182, 1
          %s1016 = scalar_lea.sflag [#allocation3], %s1015
          %s1017 = sand.u32 %s182, 1
          %s1018 = smul.addr %s1017, 256
          %s1019 = scalar_lea.vmem [#allocation2], %s1018
          %1021 = dma.done %s1016, 4096
        $region60: #{tpu_custom_call.1} parent=55 // pred_fallthru
          _
      $region56: #{tpu_custom_call.1} parent=5 // pred_fallthru
        _
    $region6: #{tpu_custom_call.1} parent=1 // loop_footer
      %s20 = sadd.s32 1, %s16
    $region7: #{tpu_custom_call.1} parent=1 // loop_footer_branch
      %15 = sbr.rel target = $region3
    $region8: #{tpu_custom_call.1} parent=1 // loop_exit
      _
    %1022 = vsyncpa [#allocation3], 1
    %s1023 = scalar_lea.sflag [#allocation3], 1
    %1024 = vsyncpa %s1023, 1

</llo_original>
